<compile_context>
chip_gen: v6e
topology: v6e:2x2x1
jax: 0.10.0
libtpu: 0.0.40
codegen_flags: <defaults>
</compile_context>

<pallas_src>
import jax
import jax.numpy as jnp
from jax.experimental import pallas as pl
from jax.experimental.pallas import tpu as pltpu


def mlp_kernel(x_ref, w1_ref, b1_ref, w2_ref, b2_ref, o_ref):
    """Fused MLP forward, batch-on-lanes.

    x_ref  : (2, Bt)  VMEM  rows = input features, lanes = batch
    w1_ref : (10, 2)  VMEM  PyTorch (out, in) layout
    b1_ref : (10, 1)  VMEM
    w2_ref : (10, 1)  VMEM  (transposed PyTorch (1, 10))
    b2_ref : (1,)     SMEM  scalar bias
    o_ref  : (1, Bt)  VMEM  lane-dense output
    """
    x0 = x_ref[0:1, :]                       # (1, Bt)
    x1 = x_ref[1:2, :]                       # (1, Bt)
    # Layer 1 on the VPU: two broadcast FMAs over the (10, Bt) tile (K=2, so
    # the MXU would be ~98% idle -- skip it entirely).
    h = w1_ref[:, 0:1] * x0 + w1_ref[:, 1:2] * x1 + b1_ref[...]   # (10, Bt)
    h = jnp.maximum(h, 0.0)                  # ReLU / clamp(min=0)
    # Layer 2: elementwise multiply (VPU) + sublane reduce (XLU) -> (1, Bt).
    y = jnp.sum(w2_ref[...] * h, axis=0, keepdims=True) + b2_ref[0]
    o_ref[...] = y.astype(o_ref.dtype)


def net_forward(x, w1, b1, w2, b2, *, block_b=1024):
    """x: (B, 2) f32; w1: (10, 2); b1: (10,); w2: (1, 10); b2: (1,). Returns (B, 1)."""
    B = x.shape[0]
    assert x.shape[1] == 2

    # Lane-dense batch tile: a power of two >= 128, capped at block_b.
    bb = max(128, min(block_b, pl.next_power_of_2(B)))
    n_blocks = pl.cdiv(B, bb)
    B_pad = n_blocks * bb

    # Wrapper-side layout plumbing: transpose + zero-pad batch up to B_pad.
    x_t = jnp.zeros((2, B_pad), jnp.float32).at[:, :B].set(x.astype(jnp.float32).T)
    w1_k = w1.astype(jnp.float32)                      # (10, 2)
    b1_k = b1.astype(jnp.float32).reshape(10, 1)       # (10, 1)
    w2_k = w2.astype(jnp.float32).T                    # (10, 1)
    b2_k = b2.astype(jnp.float32).reshape(1)           # (1,) -> SMEM scalar

    # ~71 flops/row (2x10 FMA x2 inputs + bias + relu + 10 mul + 10 add + bias).
    cost = pl.CostEstimate(
        flops=71 * B_pad,
        transcendentals=0,
        bytes_accessed=12 * B_pad + 4 * (20 + 10 + 10 + 1),
    )

    y_t = pl.pallas_call(
        mlp_kernel,
        out_shape=jax.ShapeDtypeStruct((1, B_pad), jnp.float32),
        grid=(n_blocks,),
        in_specs=[
            pl.BlockSpec((2, bb), lambda i: (0, i)),       # activations: tiled on lanes
            pl.BlockSpec((10, 2), lambda i: (0, 0)),       # w1: resident
            pl.BlockSpec((10, 1), lambda i: (0, 0)),       # b1: resident
            pl.BlockSpec((10, 1), lambda i: (0, 0)),       # w2: resident
            pl.BlockSpec(memory_space=pltpu.MemorySpace.SMEM),  # b2: SMEM scalar
        ],
        out_specs=pl.BlockSpec((1, bb), lambda i: (0, i)),
        compiler_params=pltpu.CompilerParams(
            dimension_semantics=("parallel",),             # megacore-split batch axis
        ),
        cost_estimate=cost,
    )(x_t, w1_k, b1_k, w2_k, b2_k)

    # Back to the PyTorch-facing (B, 1) layout, dropping the padded rows.
    return y_t[0, :B].reshape(B, 1)


def init_params(key):
    """Deterministic init mimicking nn.Linear's U(-1/sqrt(fan_in), 1/sqrt(fan_in)).

    Parameters are kept in the PyTorch (out, in) layout; the wrapper handles
    any kernel-side reshapes/transposes.
    """
    k1, k2, k3, k4 = jax.random.split(key, 4)
    bound1 = 1.0 / jnp.sqrt(2.0)
    bound2 = 1.0 / jnp.sqrt(10.0)
    w1 = jax.random.uniform(k1, (10, 2), jnp.float32, -bound1, bound1)
    b1 = jax.random.uniform(k2, (10,), jnp.float32, -bound1, bound1)
    w2 = jax.random.uniform(k3, (1, 10), jnp.float32, -bound2, bound2)
    b2 = jax.random.uniform(k4, (1,), jnp.float32, -bound2, bound2)
    return w1, b1, w2, b2


if __name__ == "__main__":
    key = jax.random.PRNGKey(0)
    kx, kp = jax.random.split(key)

    w1, b1, w2, b2 = init_params(kp)

    def ref_forward(xa):
        h = jnp.maximum(xa @ w1.T + b1[None, :], 0.0)
        return h @ w2.T + b2[None, :]

    # Small batch (pads up to a single 128-lane tile).
    B = 8
    x = jax.random.normal(kx, (B, 2), jnp.float32)
    y = jax.block_until_ready(net_forward(x, w1, b1, w2, b2))
    assert y.shape == (B, 1)
    assert jnp.allclose(y, ref_forward(x), atol=1e-5, rtol=1e-5)

    # Larger batch: exercises the multi-step (parallel) batch grid + padding.
    B2 = 2500
    x2 = jax.random.normal(kx, (B2, 2), jnp.float32)
    y2 = jax.block_until_ready(net_forward(x2, w1, b1, w2, b2))
    assert y2.shape == (B2, 1)
    assert jnp.allclose(y2, ref_forward(x2), atol=1e-5, rtol=1e-5)

    print("KERNEL_OK")
</pallas_src>

<mosaic_0001>
module attributes {stable_mosaic.version = 11 : i64} {
  func.func @mlp_kernel(%arg0: i32, %arg1: memref<2x128xf32, #tpu.memory_space<vmem>>, %arg2: memref<10x2xf32, #tpu.memory_space<vmem>>, %arg3: memref<10x1xf32, #tpu.memory_space<vmem>>, %arg4: memref<10x1xf32, #tpu.memory_space<vmem>>, %arg5: memref<1xf32, #tpu.memory_space<smem>>, %arg6: memref<1x128xf32, #tpu.memory_space<vmem>>) attributes {dimension_semantics = [#tpu.dimension_semantics<parallel>], iteration_bounds = array<i64: 1>, scalar_prefetch = 0 : i64, scratch_operands = 0 : i64, tpu.core_type = #tpu.core_type<tc>, window_params = [{transform_indices = @transform_0, window_bounds = array<i64: 2, 128>}, {pipeline_mode = #tpu.pipeline_mode<synchronous>, transform_indices = @transform_1, window_bounds = array<i64: 10, 2>}, {pipeline_mode = #tpu.pipeline_mode<synchronous>, transform_indices = @transform_2, window_bounds = array<i64: 10, 1>}, {pipeline_mode = #tpu.pipeline_mode<synchronous>, transform_indices = @transform_3, window_bounds = array<i64: 10, 1>}, {transform_indices = @transform_4, window_bounds = array<i64: 1>}, {transform_indices = @transform_5, window_bounds = array<i64: 1, 128>}]} {
    %c0 = arith.constant 0 : index
    %c0_0 = arith.constant 0 : index
    %0 = vector.load %arg1[%c0, %c0_0] : memref<2x128xf32, #tpu.memory_space<vmem>>, vector<1x128xf32>
    %c1 = arith.constant 1 : index
    %c0_1 = arith.constant 0 : index
    %1 = vector.load %arg1[%c1, %c0_1] : memref<2x128xf32, #tpu.memory_space<vmem>>, vector<1x128xf32>
    %c0_2 = arith.constant 0 : index
    %c0_3 = arith.constant 0 : index
    %2 = vector.load %arg2[%c0_2, %c0_3] : memref<10x2xf32, #tpu.memory_space<vmem>>, vector<10x1xf32>
    %3 = vector.broadcast %2 : vector<10x1xf32> to vector<10x128xf32>
    %4 = vector.broadcast %0 : vector<1x128xf32> to vector<10x128xf32>
    %5 = arith.mulf %3, %4 : vector<10x128xf32>
    %c0_4 = arith.constant 0 : index
    %c1_5 = arith.constant 1 : index
    %6 = vector.load %arg2[%c0_4, %c1_5] : memref<10x2xf32, #tpu.memory_space<vmem>>, vector<10x1xf32>
    %7 = vector.broadcast %6 : vector<10x1xf32> to vector<10x128xf32>
    %8 = vector.broadcast %1 : vector<1x128xf32> to vector<10x128xf32>
    %9 = arith.mulf %7, %8 : vector<10x128xf32>
    %10 = arith.addf %5, %9 : vector<10x128xf32>
    %c0_6 = arith.constant 0 : index
    %c0_7 = arith.constant 0 : index
    %11 = vector.load %arg3[%c0_6, %c0_7] : memref<10x1xf32, #tpu.memory_space<vmem>>, vector<10x1xf32>
    %12 = vector.broadcast %11 : vector<10x1xf32> to vector<10x128xf32>
    %13 = arith.addf %10, %12 : vector<10x128xf32>
    %cst = arith.constant 0.000000e+00 : f32
    %14 = vector.broadcast %cst : f32 to vector<10x128xf32>
    %15 = arith.maximumf %13, %14 : vector<10x128xf32>
    %c0_8 = arith.constant 0 : index
    %c0_9 = arith.constant 0 : index
    %16 = vector.load %arg4[%c0_8, %c0_9] : memref<10x1xf32, #tpu.memory_space<vmem>>, vector<10x1xf32>
    %17 = vector.broadcast %16 : vector<10x1xf32> to vector<10x128xf32>
    %18 = arith.mulf %17, %15 : vector<10x128xf32>
    %cst_10 = arith.constant dense<0.000000e+00> : vector<128xf32>
    %19 = vector.multi_reduction <add>, %18, %cst_10 [0] : vector<10x128xf32> to vector<128xf32>
    %20 = vector.shape_cast %19 : vector<128xf32> to vector<1x128xf32>
    %c0_11 = arith.constant 0 : index
    %21 = memref.load %arg5[%c0_11] : memref<1xf32, #tpu.memory_space<smem>>
    %22 = vector.broadcast %21 : f32 to vector<1x128xf32>
    %23 = arith.addf %20, %22 : vector<1x128xf32>
    %c0_12 = arith.constant 0 : index
    %c0_13 = arith.constant 0 : index
    %24 = vector.load %arg6[%c0_12, %c0_13] : memref<1x128xf32, #tpu.memory_space<vmem>>, vector<1x128xf32>
    tpu.vector_store %arg6[%c0_12, %c0_13], %23 {strides = array<i32>} : memref<1x128xf32, #tpu.memory_space<vmem>>, vector<1x128xf32>,
    return
  }
  func.func @transform_0(%arg0: i32) -> (i32, i32) {
    %c0_i32 = arith.constant 0 : i32
    %c0_i32_0 = arith.constant 0 : i32
    return %c0_i32, %arg0 : i32, i32
  }
  func.func @transform_1(%arg0: i32) -> (i32, i32) {
    %c0_i32 = arith.constant 0 : i32
    %c0_i32_0 = arith.constant 0 : i32
    %c0_i32_1 = arith.constant 0 : i32
    return %c0_i32, %c0_i32_0 : i32, i32
  }
  func.func @transform_2(%arg0: i32) -> (i32, i32) {
    %c0_i32 = arith.constant 0 : i32
    %c0_i32_0 = arith.constant 0 : i32
    %c0_i32_1 = arith.constant 0 : i32
    return %c0_i32, %c0_i32_0 : i32, i32
  }
  func.func @transform_3(%arg0: i32) -> (i32, i32) {
    %c0_i32 = arith.constant 0 : i32
    %c0_i32_0 = arith.constant 0 : i32
    %c0_i32_1 = arith.constant 0 : i32
    return %c0_i32, %c0_i32_0 : i32, i32
  }
  func.func @transform_4(%arg0: i32) -> i32 {
    %c0_i32 = arith.constant 0 : i32
    %c0_i32_0 = arith.constant 0 : i32
    return %c0_i32 : i32
  }
  func.func @transform_5(%arg0: i32) -> (i32, i32) {
    %c0_i32 = arith.constant 0 : i32
    %c0_i32_0 = arith.constant 0 : i32
    return %c0_i32, %arg0 : i32, i32
  }
}

</mosaic_0001>

<llo_original>
// kernel: tpu_custom_call.1
$region0: #{tpu_custom_call.1}
  #allocation0 [shape = 'u32[]', space=smem, size = 0x4, offset = 0x4, fixed_abs, tag = 'smem constant byte address 0x4 - core index']
  #allocation1 [shape = 'u32[144,128]{1,0:T(1,128)}', space=vmem, size = 0x12000, scoped, tag = 'internal scratch']
  #allocation2 [shape = 'f32[1]{0:T(128)S(6)}', space=smem, size = 0x200, scoped, tag = 'scoped memory for tpu_custom_call.1']
  %s0 = inlined_call_operand.vmem [shape: f32[2,128], index: 0, kind: input, shape index: {}]
  %s1 = inlined_call_operand.vmem [shape: f32[10,2], index: 1, kind: input, shape index: {}]
  %s2 = inlined_call_operand.vmem [shape: f32[10,1], index: 2, kind: input, shape index: {}]
  %s3 = inlined_call_operand.vmem [shape: f32[10,1], index: 3, kind: input, shape index: {}]
  %s4 = inlined_call_operand.<no memory space> [shape: f32[1], index: 4, kind: input, shape index: {}]
  %s5 = inlined_call_operand.hbm [shape: f32[1,128], index: 5, kind: output, shape index: {}]
  %s6 = sld [smem:[#allocation0]]
  $region30: #{tpu_custom_call.1} parent=0
    _
  %s8 = ssub.s32 1, %s6
  %s9 = scalar_select 0, %s8, %s6
  %10 = sst [smem:[#allocation2]] %s4
  $region1: #{tpu_custom_call.1} parent=0
    #allocation3 [shape = 'u8[512]{0}', space=vmem, size = 0x400, scoped, tag = 'output window, operand 0, single buffered']
    #allocation4 [shape = 's32[1]{0}', space=sflag, size = 0x4, scoped, tag = 'scoped memory for tpu_custom_call.1']
    %11 = vsyncpa [#allocation4], 0
    // Predicated region
    $region2: #{tpu_custom_call.1} parent=1 // pred_check
      _
    $region3: #{tpu_custom_call.1} parent=1 // pred_check_branch
      %13 = sbr.rel (0) target = $region5
    $region4: #{tpu_custom_call.1} parent=1 // pred_region
      _
    $region5: #{tpu_custom_call.1} parent=1 // pred_fallthru
      _
    // Predicated region
    $region6: #{tpu_custom_call.1} parent=1 // pred_check
      _
    $region7: #{tpu_custom_call.1} parent=1 // pred_check_branch
      %15 = sbr.rel (0) target = $region9
    $region8: #{tpu_custom_call.1} parent=1 // pred_region
      _
    $region9: #{tpu_custom_call.1} parent=1 // pred_fallthru
      _
    // Predicated region
    $region10: #{tpu_custom_call.1} parent=1 // pred_check
      _
    $region11: #{tpu_custom_call.1} parent=1 // pred_check_branch
      %17 = sbr.rel (0) target = $region13
    $region12: #{tpu_custom_call.1} parent=1 // pred_region
      _
    $region13: #{tpu_custom_call.1} parent=1 // pred_fallthru
      _
    // Predicated region
    $region14: #{tpu_custom_call.1} parent=1 // pred_check
      _
    $region15: #{tpu_custom_call.1} parent=1 // pred_check_branch
      %19 = sbr.rel (0) target = $region17
    $region16: #{tpu_custom_call.1} parent=1 // pred_region
      _
    $region17: #{tpu_custom_call.1} parent=1 // pred_fallthru
      _
    // Predicated region
    $region18: #{tpu_custom_call.1} parent=1 // pred_check
      _
    $region19: #{tpu_custom_call.1} parent=1 // pred_check_branch
      %21 = sbr.rel (0) target = $region21
    $region20: #{tpu_custom_call.1} parent=1 // pred_region
      _
    $region21: #{tpu_custom_call.1} parent=1 // pred_fallthru
      _
    %v22 = vld [vmem:[%s0] sm:$0x1]
    %v23 = vld [vmem:[%s0 + $0x1] sm:$0x1]
    %v24 = vld [vmem:[%s1] sm:$0xff]
    %v25 = vld [vmem:[%s1 + $0x8] sm:$0x3]
    %27 = vset.pattern.permute.xlu0 0
    %28 = vperm.xlu0 %27, %v24
    %v29 = vpop.permute.xlu0 %28
    %32 = vset.pattern.permute.xlu0 0
    %33 = vperm.xlu0 %32, %v25
    %v34 = vpop.permute.xlu0 %33
    %v36 = vlaneseq
    %v37 = vshrl.u32 %v36, 7
    %v38 = vsub.s32 0, %v37
    %v39 = vrot.slane %v22, %v38
    %v40 = vmul.f32 %v29, %v39
    %v41 = vmul.f32 %v34, %v39
    %42 = vset.pattern.permute.xlu0 1
    %43 = vperm.xlu0 %42, %v24
    %v44 = vpop.permute.xlu0 %43
    %46 = vset.pattern.permute.xlu0 1
    %47 = vperm.xlu0 %46, %v25
    %v48 = vpop.permute.xlu0 %47
    %v50 = vlaneseq
    %v51 = vshrl.u32 %v50, 7
    %v52 = vsub.s32 0, %v51
    %v53 = vrot.slane %v23, %v52
    %v54 = vmul.f32 %v44, %v53
    %v55 = vmul.f32 %v48, %v53
    %v56 = vadd.f32 %v40, %v54
    %v57 = vadd.f32 %v41, %v55
    %v58 = vld [vmem:[%s2] sm:$0xff]
    %v59 = vld [vmem:[%s2 + $0x8] sm:$0x3]
    %61 = vset.pattern.permute.xlu0 0
    %62 = vperm.xlu0 %61, %v58
    %v63 = vpop.permute.xlu0 %62
    %66 = vset.pattern.permute.xlu0 0
    %67 = vperm.xlu0 %66, %v59
    %v68 = vpop.permute.xlu0 %67
    %v70 = vadd.f32 %v56, %v63
    %v71 = vadd.f32 %v57, %v68
    %v72 = vmax.f32 %v70, 0.0
    %v73 = vmax.f32 %v71, 0.0
    %v74 = vld [vmem:[%s3] sm:$0xff]
    %v75 = vld [vmem:[%s3 + $0x8] sm:$0x3]
    %77 = vset.pattern.permute.xlu0 0
    %78 = vperm.xlu0 %77, %v74
    %v79 = vpop.permute.xlu0 %78
    %82 = vset.pattern.permute.xlu0 0
    %83 = vperm.xlu0 %82, %v75
    %v84 = vpop.permute.xlu0 %83
    %v86 = vmul.f32 %v79, %v72
    %v87 = vmul.f32 %v84, %v73
    %vm88 = vcmask 1041408
    %v89 = vsel %vm88, %v87, 0.0
    %v90 = vadd.f32 %v86, %v89
    %v91 = vrot.slane %v90, 4
    %v92 = vadd.f32 %v90, %v91
    %v93 = vrot.slane %v92, 2
    %v94 = vadd.f32 %v92, %v93
    %v95 = vrot.slane %v94, 1
    %v96 = vadd.f32 %v94, %v95
    %s97 = sld [smem:[#allocation2]]
    %v98 = vstv %s97
    %v99 = vadd.f32 %v96, %v98
    %100 = vst [vmem:[#allocation3] sm:$0x1] %v99
    // Predicated region
    $region22: #{tpu_custom_call.1} parent=1 // pred_check
      _
    $region23: #{tpu_custom_call.1} parent=1 // pred_check_branch
      %102 = sbr.rel (0) target = $region25
    $region24: #{tpu_custom_call.1} parent=1 // pred_region
      %s104 = ssub.s32 16, 16
      %105 = vsyncadd [#allocation4], %s104
      %s107 = sshll.u32 [#allocation3], 4
      %s108 = int_to_ptr.vmem [resolvable:$true] %s107
      %110 = dma.vmem_to_hbm [thread:$0]  %s108, 16, %s5, [#allocation4]
    $region25: #{tpu_custom_call.1} parent=1 // pred_fallthru
      _
    // Predicated region
    $region26: #{tpu_custom_call.1} parent=1 // pred_check
      _
    $region27: #{tpu_custom_call.1} parent=1 // pred_check_branch
      %112 = sbr.rel (0) target = $region29
    $region28: #{tpu_custom_call.1} parent=1 // pred_region
      %113 = dma.done [#allocation4], 16
    $region29: #{tpu_custom_call.1} parent=1 // pred_fallthru
      _
    %114 = vsyncpa [#allocation4], 1

</llo_original>
